<compile_context>
chip_gen: v6e
topology: v6e:2x2x1
jax: 0.10.0
libtpu: 0.0.40
codegen_flags: <defaults>
</compile_context>

<pallas_src>
import functools

import jax
import jax.numpy as jnp
from jax.experimental import pallas as pl
from jax.experimental.pallas import tpu as pltpu


def _round_up(a, b):
    return (a + b - 1) // b * b


def _pool_kernel(x_ref, inv_ref, o_ref, pad_ref, *, pool_size, H, W):
    # x_ref  : (H, W, T)        input tile, T channels on the lane axis
    # inv_ref: (H, W, 1)        reciprocal valid-count (count_include_pad=False)
    # o_ref  : (H, W, T)        output tile
    # pad_ref: (H+2r, W+2r, T)  f32 scratch: zero borders + tile interior
    r = pool_size // 2
    Hp, Wp = H + 2 * r, W + 2 * r
    T = x_ref.shape[-1]
    f32 = jnp.float32

    # In-VMEM "same" padding (no HBM pre-pad): zero only the thin borders
    # (re-done every grid step so it is correct under megacore sharding),
    # then place the unpadded tile in the interior.
    zrow = jnp.zeros((r, Wp, T), f32)
    pad_ref[0:r, :, :] = zrow
    pad_ref[Hp - r:Hp, :, :] = zrow
    zcol = jnp.zeros((Hp, r, T), f32)
    pad_ref[:, 0:r, :] = zcol
    pad_ref[:, Wp - r:Wp, :] = zcol
    pad_ref[r:r + H, r:r + W, :] = x_ref[...].astype(f32)

    # Separable box sum: p taps along W (sublane axis), taps read straight
    # from the scratch ref, accumulator initialized from the first tap ...
    rs = pad_ref[:, 0:W, :]
    for d in range(1, pool_size):
        rs = rs + pad_ref[:, d:d + W, :]
    # ... then p taps along H (leading axis).
    acc = rs[0:H]
    for d in range(1, pool_size):
        acc = acc + rs[d:d + H]

    # avg-pool (count_include_pad=False) minus identity: one fused mul+sub.
    o_ref[...] = (acc * inv_ref[...] - x_ref[...].astype(f32)).astype(o_ref.dtype)


def _vmem_capacity_bytes():
    try:
        return int(pltpu.get_tpu_info().vmem_capacity_bytes)
    except Exception:
        return 64 * 1024 * 1024          # conservative (v7x per-TensorCore)


def _per_lane_bytes(H, W, r, itemsize):
    # Per-lane-column VMEM footprint: double-buffered in/out blocks at the
    # input dtype, the padded f32 scratch, the row-sum temporary and ~4 live
    # f32 tile-sized values in the kernel body.
    w8 = _round_up(W, 8)
    wp8 = _round_up(W + 2 * r, 8)
    return (H * w8 * itemsize * 4
            + (H + 2 * r) * wp8 * 4
            + (H + 2 * r) * w8 * 4
            + H * w8 * 4 * 4)


def _pick_tile_n(N, H, W, r, itemsize, budget):
    """Lane tile (multiple of 128) and padded channel count Np = grid * tile."""
    per_t = _per_lane_bytes(H, W, r, itemsize)
    cap = max(128, (budget // per_t) // 128 * 128)
    n128 = _round_up(N, 128)
    if n128 <= cap:                      # one big step (no grid>=2 constraint)
        return n128, n128
    best = None
    for tile in range(cap, 127, -128):
        npad = _round_up(n128, tile)
        steps = npad // tile
        odd = 1 if (steps > 1 and steps % 2 == 1) else 0   # v7x: 2 TensorCores
        key = (odd, npad - n128, steps)
        if best is None or key < best[0]:
            best = (key, tile, npad)
    return best[1], best[2]


def pooling(x, pool_size=3):
    """PoolFormer Pooling: AvgPool2d(pool, stride=1, pad=pool//2,
    count_include_pad=False)(x) - x.   x: [B, C, H, W], odd pool_size."""
    assert pool_size % 2 == 1, "stride-1 'same' pooling expects an odd pool_size"
    B, C, H, W = x.shape
    r = pool_size // 2
    N = B * C
    itemsize = jnp.dtype(x.dtype).itemsize

    vmem_cap = _vmem_capacity_bytes()
    budget = min(28 * 1024 * 1024, vmem_cap // 4)
    tile_n, Np = _pick_tile_n(N, H, W, r, itemsize, budget)
    grid = (Np // tile_n,)

    # Channels-last lane-dense relayout: (H, W, Np) with N = B*C on the
    # 128-lane axis (the pad + transpose fuse into a single XLA copy).
    xt = jnp.pad(x.reshape(N, H, W), ((0, Np - N), (0, 0), (0, 0)))
    xt = jnp.transpose(xt, (1, 2, 0))                      # (H, W, Np)

    # Reciprocal of the number of *valid* window elements per output pixel
    # (count_include_pad=False): tiny resident plane -> multiply, not divide.
    idx_h = jnp.arange(H, dtype=jnp.float32)
    idx_w = jnp.arange(W, dtype=jnp.float32)
    cnt_h = jnp.minimum(idx_h + r, H - 1) - jnp.maximum(idx_h - r, 0) + 1.0
    cnt_w = jnp.minimum(idx_w + r, W - 1) - jnp.maximum(idx_w - r, 0) + 1.0
    inv_cnt = (1.0 / (cnt_h[:, None] * cnt_w[None, :]))[:, :, None]   # (H, W, 1)

    step_bytes = tile_n * _per_lane_bytes(H, W, r, itemsize)
    vmem_limit = int(min(vmem_cap // 2, max(2 * step_bytes, 16 * 1024 * 1024)))

    flops = Np * H * W * (2 * (pool_size - 1) + 2)
    bytes_accessed = 2 * Np * H * W * itemsize + H * W * 4   # inv plane once

    out = pl.pallas_call(
        functools.partial(_pool_kernel, pool_size=pool_size, H=H, W=W),
        out_shape=jax.ShapeDtypeStruct((H, W, Np), x.dtype),
        grid_spec=pltpu.PrefetchScalarGridSpec(
            num_scalar_prefetch=0,
            grid=grid,
            in_specs=[
                pl.BlockSpec((H, W, tile_n), lambda i: (0, 0, i)),
                pl.BlockSpec((H, W, 1), lambda i: (0, 0, 0)),
            ],
            out_specs=pl.BlockSpec((H, W, tile_n), lambda i: (0, 0, i)),
            scratch_shapes=[
                pltpu.VMEM((H + 2 * r, W + 2 * r, tile_n), jnp.float32),
            ],
        ),
        compiler_params=pltpu.CompilerParams(
            dimension_semantics=("parallel",),
            vmem_limit_bytes=vmem_limit,
        ),
        cost_estimate=pl.CostEstimate(
            flops=int(flops), transcendentals=0,
            bytes_accessed=int(bytes_accessed)),
    )(xt, inv_cnt)

    # Back to [B, C, H, W], dropping the lane padding.
    return jnp.transpose(out, (2, 0, 1))[:N].reshape(B, C, H, W)


def _reference(x, pool_size=3):
    """Pure-JAX reference: AvgPool2d(count_include_pad=False)(x) - x."""
    B, C, H, W = x.shape
    r = pool_size // 2
    xf = x.astype(jnp.float32)
    xp = jnp.pad(xf, ((0, 0), (0, 0), (r, r), (r, r)))
    ones = jnp.pad(jnp.ones((H, W), jnp.float32), ((r, r), (r, r)))
    s = jnp.zeros_like(xf)
    cnt = jnp.zeros((H, W), jnp.float32)
    for dh in range(pool_size):
        for dw in range(pool_size):
            s = s + xp[:, :, dh:dh + H, dw:dw + W]
            cnt = cnt + ones[dh:dh + H, dw:dw + W]
    return (s / cnt[None, None] - xf).astype(x.dtype)


if __name__ == "__main__":
    B, C, H, W = 2, 4, 16, 16
    key = jax.random.PRNGKey(0)
    x = jax.random.normal(key, (B, C, H, W), dtype=jnp.float32)

    out = pooling(x, pool_size=3)
    out = jax.block_until_ready(out)

    ref = _reference(x, pool_size=3)
    assert out.shape == (B, C, H, W)
    assert jnp.allclose(out, ref, atol=1e-5, rtol=1e-5), "mismatch vs reference"
    print("KERNEL_OK")
</pallas_src>

<mosaic_0001>
module attributes {stable_mosaic.version = 11 : i64} {
  func.func @_pool_kernel(%arg0: i32, %arg1: memref<16x16x128xf32, #tpu.memory_space<vmem>>, %arg2: memref<16x16x1xf32, #tpu.memory_space<vmem>>, %arg3: memref<16x16x128xf32, #tpu.memory_space<vmem>>, %arg4: memref<18x18x128xf32, #tpu.memory_space<vmem>>) attributes {dimension_semantics = [#tpu.dimension_semantics<parallel>], iteration_bounds = array<i64: 1>, scalar_prefetch = 0 : i64, scratch_operands = 1 : i64, tpu.core_type = #tpu.core_type<tc>, window_params = [{transform_indices = @transform_0, window_bounds = array<i64: 16, 16, 128>}, {pipeline_mode = #tpu.pipeline_mode<synchronous>, transform_indices = @transform_1, window_bounds = array<i64: 16, 16, 1>}, {transform_indices = @transform_2, window_bounds = array<i64: 16, 16, 128>}]} {
    %cst = arith.constant 0.000000e+00 : f32
    %0 = vector.broadcast %cst : f32 to vector<1x18x128xf32>
    %c0 = arith.constant 0 : index
    %c0_0 = arith.constant 0 : index
    %c0_1 = arith.constant 0 : index
    %1 = vector.load %arg4[%c0, %c0_0, %c0_1] : memref<18x18x128xf32, #tpu.memory_space<vmem>>, vector<1x18x128xf32>
    tpu.vector_store %arg4[%c0, %c0_0, %c0_1], %0 {strides = array<i32>} : memref<18x18x128xf32, #tpu.memory_space<vmem>>, vector<1x18x128xf32>,
    %c17 = arith.constant 17 : index
    %c0_2 = arith.constant 0 : index
    %c0_3 = arith.constant 0 : index
    %2 = vector.load %arg4[%c17, %c0_2, %c0_3] : memref<18x18x128xf32, #tpu.memory_space<vmem>>, vector<1x18x128xf32>
    tpu.vector_store %arg4[%c17, %c0_2, %c0_3], %0 {strides = array<i32>} : memref<18x18x128xf32, #tpu.memory_space<vmem>>, vector<1x18x128xf32>,
    %cst_4 = arith.constant 0.000000e+00 : f32
    %3 = vector.broadcast %cst_4 : f32 to vector<18x1x128xf32>
    %c0_5 = arith.constant 0 : index
    %c0_6 = arith.constant 0 : index
    %c0_7 = arith.constant 0 : index
    %4 = vector.load %arg4[%c0_5, %c0_6, %c0_7] : memref<18x18x128xf32, #tpu.memory_space<vmem>>, vector<18x1x128xf32>
    tpu.vector_store %arg4[%c0_5, %c0_6, %c0_7], %3 {strides = array<i32>} : memref<18x18x128xf32, #tpu.memory_space<vmem>>, vector<18x1x128xf32>,
    %c0_8 = arith.constant 0 : index
    %c17_9 = arith.constant 17 : index
    %c0_10 = arith.constant 0 : index
    %5 = vector.load %arg4[%c0_8, %c17_9, %c0_10] : memref<18x18x128xf32, #tpu.memory_space<vmem>>, vector<18x1x128xf32>
    tpu.vector_store %arg4[%c0_8, %c17_9, %c0_10], %3 {strides = array<i32>} : memref<18x18x128xf32, #tpu.memory_space<vmem>>, vector<18x1x128xf32>,
    %c0_11 = arith.constant 0 : index
    %c0_12 = arith.constant 0 : index
    %c0_13 = arith.constant 0 : index
    %6 = vector.load %arg1[%c0_11, %c0_12, %c0_13] : memref<16x16x128xf32, #tpu.memory_space<vmem>>, vector<16x16x128xf32>
    %c1 = arith.constant 1 : index
    %c1_14 = arith.constant 1 : index
    %c0_15 = arith.constant 0 : index
    %7 = vector.load %arg4[%c1, %c1_14, %c0_15] : memref<18x18x128xf32, #tpu.memory_space<vmem>>, vector<16x16x128xf32>
    tpu.vector_store %arg4[%c1, %c1_14, %c0_15], %6 {strides = array<i32>} : memref<18x18x128xf32, #tpu.memory_space<vmem>>, vector<16x16x128xf32>,
    %c0_16 = arith.constant 0 : index
    %c0_17 = arith.constant 0 : index
    %c0_18 = arith.constant 0 : index
    %8 = vector.load %arg4[%c0_16, %c0_17, %c0_18] : memref<18x18x128xf32, #tpu.memory_space<vmem>>, vector<18x16x128xf32>
    %c0_19 = arith.constant 0 : index
    %c1_20 = arith.constant 1 : index
    %c0_21 = arith.constant 0 : index
    %9 = vector.load %arg4[%c0_19, %c1_20, %c0_21] : memref<18x18x128xf32, #tpu.memory_space<vmem>>, vector<18x16x128xf32>
    %10 = arith.addf %8, %9 : vector<18x16x128xf32>
    %c0_22 = arith.constant 0 : index
    %c2 = arith.constant 2 : index
    %c0_23 = arith.constant 0 : index
    %11 = vector.load %arg4[%c0_22, %c2, %c0_23] : memref<18x18x128xf32, #tpu.memory_space<vmem>>, vector<18x16x128xf32>
    %12 = arith.addf %10, %11 : vector<18x16x128xf32>
    %13 = vector.extract_strided_slice %12 {offsets = [0, 0, 0], sizes = [16, 16, 128], strides = [1, 1, 1]} : vector<18x16x128xf32> to vector<16x16x128xf32>
    %14 = vector.extract_strided_slice %12 {offsets = [1, 0, 0], sizes = [16, 16, 128], strides = [1, 1, 1]} : vector<18x16x128xf32> to vector<16x16x128xf32>
    %15 = arith.addf %13, %14 : vector<16x16x128xf32>
    %16 = vector.extract_strided_slice %12 {offsets = [2, 0, 0], sizes = [16, 16, 128], strides = [1, 1, 1]} : vector<18x16x128xf32> to vector<16x16x128xf32>
    %17 = arith.addf %15, %16 : vector<16x16x128xf32>
    %c0_24 = arith.constant 0 : index
    %c0_25 = arith.constant 0 : index
    %c0_26 = arith.constant 0 : index
    %18 = vector.load %arg2[%c0_24, %c0_25, %c0_26] : memref<16x16x1xf32, #tpu.memory_space<vmem>>, vector<16x16x1xf32>
    %19 = vector.broadcast %18 : vector<16x16x1xf32> to vector<16x16x128xf32>
    %20 = arith.mulf %17, %19 : vector<16x16x128xf32>
    %c0_27 = arith.constant 0 : index
    %c0_28 = arith.constant 0 : index
    %c0_29 = arith.constant 0 : index
    %21 = vector.load %arg1[%c0_27, %c0_28, %c0_29] : memref<16x16x128xf32, #tpu.memory_space<vmem>>, vector<16x16x128xf32>
    %22 = arith.subf %20, %21 : vector<16x16x128xf32>
    %c0_30 = arith.constant 0 : index
    %c0_31 = arith.constant 0 : index
    %c0_32 = arith.constant 0 : index
    %23 = vector.load %arg3[%c0_30, %c0_31, %c0_32] : memref<16x16x128xf32, #tpu.memory_space<vmem>>, vector<16x16x128xf32>
    tpu.vector_store %arg3[%c0_30, %c0_31, %c0_32], %22 {strides = array<i32>} : memref<16x16x128xf32, #tpu.memory_space<vmem>>, vector<16x16x128xf32>,
    return
  }
  func.func @transform_0(%arg0: i32) -> (i32, i32, i32) {
    %c0_i32 = arith.constant 0 : i32
    %c0_i32_0 = arith.constant 0 : i32
    %c0_i32_1 = arith.constant 0 : i32
    return %c0_i32, %c0_i32_0, %arg0 : i32, i32, i32
  }
  func.func @transform_1(%arg0: i32) -> (i32, i32, i32) {
    %c0_i32 = arith.constant 0 : i32
    %c0_i32_0 = arith.constant 0 : i32
    %c0_i32_1 = arith.constant 0 : i32
    %c0_i32_2 = arith.constant 0 : i32
    return %c0_i32, %c0_i32_0, %c0_i32_1 : i32, i32, i32
  }
  func.func @transform_2(%arg0: i32) -> (i32, i32, i32) {
    %c0_i32 = arith.constant 0 : i32
    %c0_i32_0 = arith.constant 0 : i32
    %c0_i32_1 = arith.constant 0 : i32
    return %c0_i32, %c0_i32_0, %arg0 : i32, i32, i32
  }
}

</mosaic_0001>

<llo_original>
// kernel: tpu_custom_call.1
$region0: #{tpu_custom_call.1}
  #allocation0 [shape = 'u32[]', space=smem, size = 0x4, offset = 0x4, fixed_abs, tag = 'smem constant byte address 0x4 - core index']
  #allocation1 [shape = 'u32[144,128]{1,0:T(1,128)}', space=vmem, size = 0x12000, scoped, tag = 'internal scratch']
  #allocation2 [shape = 'f32[18,18,128]{2,1,0:T(8,128)}', space=vmem, size = 0x36000, scoped, tag = 'scratch operand']
  %s0 = inlined_call_operand.vmem [shape: f32[16,16,128], index: 0, kind: input, shape index: {}]
  %s1 = inlined_call_operand.vmem [shape: f32[16,16,1], index: 1, kind: input, shape index: {}]
  %s2 = inlined_call_operand.hbm [shape: f32[16,16,128], index: 2, kind: output, shape index: {}]
  %s3 = sld [smem:[#allocation0]]
  $region18: #{tpu_custom_call.1} parent=0
    _
  %s5 = ssub.s32 1, %s3
  %s6 = scalar_select 0, %s5, %s3
  $region1: #{tpu_custom_call.1} parent=0
    #allocation3 [shape = 'u8[131072]{0}', space=vmem, size = 0x20000, scoped, tag = 'output window, operand 0, single buffered']
    #allocation4 [shape = 's32[1]{0}', space=sflag, size = 0x4, scoped, tag = 'scoped memory for tpu_custom_call.1']
    %7 = vsyncpa [#allocation4], 0
    // Predicated region
    $region2: #{tpu_custom_call.1} parent=1 // pred_check
      _
    $region3: #{tpu_custom_call.1} parent=1 // pred_check_branch
      %9 = sbr.rel (0) target = $region5
    $region4: #{tpu_custom_call.1} parent=1 // pred_region
      _
    $region5: #{tpu_custom_call.1} parent=1 // pred_fallthru
      _
    // Predicated region
    $region6: #{tpu_custom_call.1} parent=1 // pred_check
      _
    $region7: #{tpu_custom_call.1} parent=1 // pred_check_branch
      %11 = sbr.rel (0) target = $region9
    $region8: #{tpu_custom_call.1} parent=1 // pred_region
      _
    $region9: #{tpu_custom_call.1} parent=1 // pred_fallthru
      _
    %12 = vst [vmem:[#allocation2] sm:$0xff] 0.0
    %13 = vst [vmem:[#allocation2 + $0x8] sm:$0xff] 0.0
    %14 = vst [vmem:[#allocation2 + $0x10] sm:$0x3] 0.0
    %s15 = scalar_lea.vmem [#allocation2], 408
    %16 = vst [vmem:[%s15] sm:$0xff] 0.0
    %17 = vst [vmem:[%s15 + $0x8] sm:$0xff] 0.0
    %18 = vst [vmem:[%s15 + $0x10] sm:$0x3] 0.0
    %19 = vst [vmem:[#allocation2] sm:$0x1] 0.0
    %20 = vst [vmem:[#allocation2 + $0x18] sm:$0x1] 0.0
    %21 = vst [vmem:[#allocation2 + $0x30] sm:$0x1] 0.0
    %22 = vst [vmem:[#allocation2 + $0x48] sm:$0x1] 0.0
    %23 = vst [vmem:[#allocation2 + $0x60] sm:$0x1] 0.0
    %24 = vst [vmem:[#allocation2 + $0x78] sm:$0x1] 0.0
    %25 = vst [vmem:[#allocation2 + $0x90] sm:$0x1] 0.0
    %26 = vst [vmem:[#allocation2 + $0xa8] sm:$0x1] 0.0
    %27 = vst [vmem:[#allocation2 + $0xc0] sm:$0x1] 0.0
    %28 = vst [vmem:[#allocation2 + $0xd8] sm:$0x1] 0.0
    %29 = vst [vmem:[#allocation2 + $0xf0] sm:$0x1] 0.0
    %30 = vst [vmem:[#allocation2 + $0x108] sm:$0x1] 0.0
    %31 = vst [vmem:[#allocation2 + $0x120] sm:$0x1] 0.0
    %32 = vst [vmem:[#allocation2 + $0x138] sm:$0x1] 0.0
    %33 = vst [vmem:[#allocation2 + $0x150] sm:$0x1] 0.0
    %34 = vst [vmem:[#allocation2 + $0x168] sm:$0x1] 0.0
    %35 = vst [vmem:[#allocation2 + $0x180] sm:$0x1] 0.0
    %36 = vst [vmem:[#allocation2 + $0x198] sm:$0x1] 0.0
    %37 = vst [vmem:[#allocation2 + $0x11] sm:$0x1] 0.0
    %38 = vst [vmem:[#allocation2 + $0x29] sm:$0x1] 0.0
    %39 = vst [vmem:[#allocation2 + $0x41] sm:$0x1] 0.0
    %40 = vst [vmem:[#allocation2 + $0x59] sm:$0x1] 0.0
    %41 = vst [vmem:[#allocation2 + $0x71] sm:$0x1] 0.0
    %42 = vst [vmem:[#allocation2 + $0x89] sm:$0x1] 0.0
    %43 = vst [vmem:[#allocation2 + $0xa1] sm:$0x1] 0.0
    %44 = vst [vmem:[#allocation2 + $0xb9] sm:$0x1] 0.0
    %45 = vst [vmem:[#allocation2 + $0xd1] sm:$0x1] 0.0
    %46 = vst [vmem:[#allocation2 + $0xe9] sm:$0x1] 0.0
    %47 = vst [vmem:[#allocation2 + $0x101] sm:$0x1] 0.0
    %48 = vst [vmem:[#allocation2 + $0x119] sm:$0x1] 0.0
    %49 = vst [vmem:[#allocation2 + $0x131] sm:$0x1] 0.0
    %50 = vst [vmem:[#allocation2 + $0x149] sm:$0x1] 0.0
    %51 = vst [vmem:[#allocation2 + $0x161] sm:$0x1] 0.0
    %52 = vst [vmem:[#allocation2 + $0x179] sm:$0x1] 0.0
    %53 = vst [vmem:[#allocation2 + $0x191] sm:$0x1] 0.0
    %54 = vst [vmem:[#allocation2 + $0x1a9] sm:$0x1] 0.0
    %v55 = vld [vmem:[%s0] sm:$0xff]
    %v56 = vld [vmem:[%s0 + $0x8] sm:$0xff]
    %v57 = vld [vmem:[%s0 + $0x10] sm:$0xff]
    %v58 = vld [vmem:[%s0 + $0x18] sm:$0xff]
    %v59 = vld [vmem:[%s0 + $0x20] sm:$0xff]
    %v60 = vld [vmem:[%s0 + $0x28] sm:$0xff]
    %v61 = vld [vmem:[%s0 + $0x30] sm:$0xff]
    %v62 = vld [vmem:[%s0 + $0x38] sm:$0xff]
    %v63 = vld [vmem:[%s0 + $0x40] sm:$0xff]
    %v64 = vld [vmem:[%s0 + $0x48] sm:$0xff]
    %v65 = vld [vmem:[%s0 + $0x50] sm:$0xff]
    %v66 = vld [vmem:[%s0 + $0x58] sm:$0xff]
    %v67 = vld [vmem:[%s0 + $0x60] sm:$0xff]
    %v68 = vld [vmem:[%s0 + $0x68] sm:$0xff]
    %v69 = vld [vmem:[%s0 + $0x70] sm:$0xff]
    %v70 = vld [vmem:[%s0 + $0x78] sm:$0xff]
    %v71 = vld [vmem:[%s0 + $0x80] sm:$0xff]
    %v72 = vld [vmem:[%s0 + $0x88] sm:$0xff]
    %v73 = vld [vmem:[%s0 + $0x90] sm:$0xff]
    %v74 = vld [vmem:[%s0 + $0x98] sm:$0xff]
    %v75 = vld [vmem:[%s0 + $0xa0] sm:$0xff]
    %v76 = vld [vmem:[%s0 + $0xa8] sm:$0xff]
    %v77 = vld [vmem:[%s0 + $0xb0] sm:$0xff]
    %v78 = vld [vmem:[%s0 + $0xb8] sm:$0xff]
    %v79 = vld [vmem:[%s0 + $0xc0] sm:$0xff]
    %v80 = vld [vmem:[%s0 + $0xc8] sm:$0xff]
    %v81 = vld [vmem:[%s0 + $0xd0] sm:$0xff]
    %v82 = vld [vmem:[%s0 + $0xd8] sm:$0xff]
    %v83 = vld [vmem:[%s0 + $0xe0] sm:$0xff]
    %v84 = vld [vmem:[%s0 + $0xe8] sm:$0xff]
    %v85 = vld [vmem:[%s0 + $0xf0] sm:$0xff]
    %v86 = vld [vmem:[%s0 + $0xf8] sm:$0xff]
    %s87 = scalar_lea.vmem [#allocation2], 24
    %88 = vst [vmem:[%s87 + $0x1] sm:$0xff] %v55
    %89 = vst [vmem:[%s87 + $0x9] sm:$0xff] %v56
    %90 = vst [vmem:[%s87 + $0x19] sm:$0xff] %v57
    %91 = vst [vmem:[%s87 + $0x21] sm:$0xff] %v58
    %92 = vst [vmem:[%s87 + $0x31] sm:$0xff] %v59
    %93 = vst [vmem:[%s87 + $0x39] sm:$0xff] %v60
    %94 = vst [vmem:[%s87 + $0x49] sm:$0xff] %v61
    %95 = vst [vmem:[%s87 + $0x51] sm:$0xff] %v62
    %96 = vst [vmem:[%s87 + $0x61] sm:$0xff] %v63
    %97 = vst [vmem:[%s87 + $0x69] sm:$0xff] %v64
    %98 = vst [vmem:[%s87 + $0x79] sm:$0xff] %v65
    %99 = vst [vmem:[%s87 + $0x81] sm:$0xff] %v66
    %100 = vst [vmem:[%s87 + $0x91] sm:$0xff] %v67
    %101 = vst [vmem:[%s87 + $0x99] sm:$0xff] %v68
    %102 = vst [vmem:[%s87 + $0xa9] sm:$0xff] %v69
    %103 = vst [vmem:[%s87 + $0xb1] sm:$0xff] %v70
    %104 = vst [vmem:[%s87 + $0xc1] sm:$0xff] %v71
    %105 = vst [vmem:[%s87 + $0xc9] sm:$0xff] %v72
    %106 = vst [vmem:[%s87 + $0xd9] sm:$0xff] %v73
    %107 = vst [vmem:[%s87 + $0xe1] sm:$0xff] %v74
    %108 = vst [vmem:[%s87 + $0xf1] sm:$0xff] %v75
    %109 = vst [vmem:[%s87 + $0xf9] sm:$0xff] %v76
    %110 = vst [vmem:[%s87 + $0x109] sm:$0xff] %v77
    %111 = vst [vmem:[%s87 + $0x111] sm:$0xff] %v78
    %112 = vst [vmem:[%s87 + $0x121] sm:$0xff] %v79
    %113 = vst [vmem:[%s87 + $0x129] sm:$0xff] %v80
    %114 = vst [vmem:[%s87 + $0x139] sm:$0xff] %v81
    %115 = vst [vmem:[%s87 + $0x141] sm:$0xff] %v82
    %116 = vst [vmem:[%s87 + $0x151] sm:$0xff] %v83
    %117 = vst [vmem:[%s87 + $0x159] sm:$0xff] %v84
    %118 = vst [vmem:[%s87 + $0x169] sm:$0xff] %v85
    %119 = vst [vmem:[%s87 + $0x171] sm:$0xff] %v86
    %v120 = vld [vmem:[#allocation2] sm:$0xff]
    %v121 = vld [vmem:[#allocation2 + $0x8] sm:$0xff]
    %v122 = vld [vmem:[#allocation2 + $0x18] sm:$0xff]
    %v123 = vld [vmem:[#allocation2 + $0x20] sm:$0xff]
    %v124 = vld [vmem:[#allocation2 + $0x30] sm:$0xff]
    %v125 = vld [vmem:[#allocation2 + $0x38] sm:$0xff]
    %v126 = vld [vmem:[#allocation2 + $0x48] sm:$0xff]
    %v127 = vld [vmem:[#allocation2 + $0x50] sm:$0xff]
    %v128 = vld [vmem:[#allocation2 + $0x60] sm:$0xff]
    %v129 = vld [vmem:[#allocation2 + $0x68] sm:$0xff]
    %v130 = vld [vmem:[#allocation2 + $0x78] sm:$0xff]
    %v131 = vld [vmem:[#allocation2 + $0x80] sm:$0xff]
    %v132 = vld [vmem:[#allocation2 + $0x90] sm:$0xff]
    %v133 = vld [vmem:[#allocation2 + $0x98] sm:$0xff]
    %v134 = vld [vmem:[#allocation2 + $0xa8] sm:$0xff]
    %v135 = vld [vmem:[#allocation2 + $0xb0] sm:$0xff]
    %v136 = vld [vmem:[#allocation2 + $0xc0] sm:$0xff]
    %v137 = vld [vmem:[#allocation2 + $0xc8] sm:$0xff]
    %v138 = vld [vmem:[#allocation2 + $0xd8] sm:$0xff]
    %v139 = vld [vmem:[#allocation2 + $0xe0] sm:$0xff]
    %v140 = vld [vmem:[#allocation2 + $0xf0] sm:$0xff]
    %v141 = vld [vmem:[#allocation2 + $0xf8] sm:$0xff]
    %v142 = vld [vmem:[#allocation2 + $0x108] sm:$0xff]
    %v143 = vld [vmem:[#allocation2 + $0x110] sm:$0xff]
    %v144 = vld [vmem:[#allocation2 + $0x120] sm:$0xff]
    %v145 = vld [vmem:[#allocation2 + $0x128] sm:$0xff]
    %v146 = vld [vmem:[#allocation2 + $0x138] sm:$0xff]
    %v147 = vld [vmem:[#allocation2 + $0x140] sm:$0xff]
    %v148 = vld [vmem:[#allocation2 + $0x150] sm:$0xff]
    %v149 = vld [vmem:[#allocation2 + $0x158] sm:$0xff]
    %v150 = vld [vmem:[#allocation2 + $0x168] sm:$0xff]
    %v151 = vld [vmem:[#allocation2 + $0x170] sm:$0xff]
    %v152 = vld [vmem:[#allocation2 + $0x180] sm:$0xff]
    %v153 = vld [vmem:[#allocation2 + $0x188] sm:$0xff]
    %v154 = vld [vmem:[#allocation2 + $0x198] sm:$0xff]
    %v155 = vld [vmem:[#allocation2 + $0x1a0] sm:$0xff]
    %v156 = vld [vmem:[#allocation2 + $0x1] sm:$0xff]
    %v157 = vld [vmem:[#allocation2 + $0x9] sm:$0xff]
    %v158 = vld [vmem:[#allocation2 + $0x19] sm:$0xff]
    %v159 = vld [vmem:[#allocation2 + $0x21] sm:$0xff]
    %v160 = vld [vmem:[#allocation2 + $0x31] sm:$0xff]
    %v161 = vld [vmem:[#allocation2 + $0x39] sm:$0xff]
    %v162 = vld [vmem:[#allocation2 + $0x49] sm:$0xff]
    %v163 = vld [vmem:[#allocation2 + $0x51] sm:$0xff]
    %v164 = vld [vmem:[#allocation2 + $0x61] sm:$0xff]
    %v165 = vld [vmem:[#allocation2 + $0x69] sm:$0xff]
    %v166 = vld [vmem:[#allocation2 + $0x79] sm:$0xff]
    %v167 = vld [vmem:[#allocation2 + $0x81] sm:$0xff]
    %v168 = vld [vmem:[#allocation2 + $0x91] sm:$0xff]
    %v169 = vld [vmem:[#allocation2 + $0x99] sm:$0xff]
    %v170 = vld [vmem:[#allocation2 + $0xa9] sm:$0xff]
    %v171 = vld [vmem:[#allocation2 + $0xb1] sm:$0xff]
    %v172 = vld [vmem:[#allocation2 + $0xc1] sm:$0xff]
    %v173 = vld [vmem:[#allocation2 + $0xc9] sm:$0xff]
    %v174 = vld [vmem:[#allocation2 + $0xd9] sm:$0xff]
    %v175 = vld [vmem:[#allocation2 + $0xe1] sm:$0xff]
    %v176 = vld [vmem:[#allocation2 + $0xf1] sm:$0xff]
    %v177 = vld [vmem:[#allocation2 + $0xf9] sm:$0xff]
    %v178 = vld [vmem:[#allocation2 + $0x109] sm:$0xff]
    %v179 = vld [vmem:[#allocation2 + $0x111] sm:$0xff]
    %v180 = vld [vmem:[#allocation2 + $0x121] sm:$0xff]
    %v181 = vld [vmem:[#allocation2 + $0x129] sm:$0xff]
    %v182 = vld [vmem:[#allocation2 + $0x139] sm:$0xff]
    %v183 = vld [vmem:[#allocation2 + $0x141] sm:$0xff]
    %v184 = vld [vmem:[#allocation2 + $0x151] sm:$0xff]
    %v185 = vld [vmem:[#allocation2 + $0x159] sm:$0xff]
    %v186 = vld [vmem:[#allocation2 + $0x169] sm:$0xff]
    %v187 = vld [vmem:[#allocation2 + $0x171] sm:$0xff]
    %v188 = vld [vmem:[#allocation2 + $0x181] sm:$0xff]
    %v189 = vld [vmem:[#allocation2 + $0x189] sm:$0xff]
    %v190 = vld [vmem:[#allocation2 + $0x199] sm:$0xff]
    %v191 = vld [vmem:[#allocation2 + $0x1a1] sm:$0xff]
    %v192 = vadd.f32 %v120, %v156
    %v193 = vadd.f32 %v121, %v157
    %v194 = vadd.f32 %v122, %v158
    %v195 = vadd.f32 %v123, %v159
    %v196 = vadd.f32 %v124, %v160
    %v197 = vadd.f32 %v125, %v161
    %v198 = vadd.f32 %v126, %v162
    %v199 = vadd.f32 %v127, %v163
    %v200 = vadd.f32 %v128, %v164
    %v201 = vadd.f32 %v129, %v165
    %v202 = vadd.f32 %v130, %v166
    %v203 = vadd.f32 %v131, %v167
    %v204 = vadd.f32 %v132, %v168
    %v205 = vadd.f32 %v133, %v169
    %v206 = vadd.f32 %v134, %v170
    %v207 = vadd.f32 %v135, %v171
    %v208 = vadd.f32 %v136, %v172
    %v209 = vadd.f32 %v137, %v173
    %v210 = vadd.f32 %v138, %v174
    %v211 = vadd.f32 %v139, %v175
    %v212 = vadd.f32 %v140, %v176
    %v213 = vadd.f32 %v141, %v177
    %v214 = vadd.f32 %v142, %v178
    %v215 = vadd.f32 %v143, %v179
    %v216 = vadd.f32 %v144, %v180
    %v217 = vadd.f32 %v145, %v181
    %v218 = vadd.f32 %v146, %v182
    %v219 = vadd.f32 %v147, %v183
    %v220 = vadd.f32 %v148, %v184
    %v221 = vadd.f32 %v149, %v185
    %v222 = vadd.f32 %v150, %v186
    %v223 = vadd.f32 %v151, %v187
    %v224 = vadd.f32 %v152, %v188
    %v225 = vadd.f32 %v153, %v189
    %v226 = vadd.f32 %v154, %v190
    %v227 = vadd.f32 %v155, %v191
    %v228 = vld [vmem:[#allocation2 + $0x2] sm:$0xff]
    %v229 = vld [vmem:[#allocation2 + $0xa] sm:$0xff]
    %v230 = vld [vmem:[#allocation2 + $0x1a] sm:$0xff]
    %v231 = vld [vmem:[#allocation2 + $0x22] sm:$0xff]
    %v232 = vld [vmem:[#allocation2 + $0x32] sm:$0xff]
    %v233 = vld [vmem:[#allocation2 + $0x3a] sm:$0xff]
    %v234 = vld [vmem:[#allocation2 + $0x4a] sm:$0xff]
    %v235 = vld [vmem:[#allocation2 + $0x52] sm:$0xff]
    %v236 = vld [vmem:[#allocation2 + $0x62] sm:$0xff]
    %v237 = vld [vmem:[#allocation2 + $0x6a] sm:$0xff]
    %v238 = vld [vmem:[#allocation2 + $0x7a] sm:$0xff]
    %v239 = vld [vmem:[#allocation2 + $0x82] sm:$0xff]
    %v240 = vld [vmem:[#allocation2 + $0x92] sm:$0xff]
    %v241 = vld [vmem:[#allocation2 + $0x9a] sm:$0xff]
    %v242 = vld [vmem:[#allocation2 + $0xaa] sm:$0xff]
    %v243 = vld [vmem:[#allocation2 + $0xb2] sm:$0xff]
    %v244 = vld [vmem:[#allocation2 + $0xc2] sm:$0xff]
    %v245 = vld [vmem:[#allocation2 + $0xca] sm:$0xff]
    %v246 = vld [vmem:[#allocation2 + $0xda] sm:$0xff]
    %v247 = vld [vmem:[#allocation2 + $0xe2] sm:$0xff]
    %v248 = vld [vmem:[#allocation2 + $0xf2] sm:$0xff]
    %v249 = vld [vmem:[#allocation2 + $0xfa] sm:$0xff]
    %v250 = vld [vmem:[#allocation2 + $0x10a] sm:$0xff]
    %v251 = vld [vmem:[#allocation2 + $0x112] sm:$0xff]
    %v252 = vld [vmem:[#allocation2 + $0x122] sm:$0xff]
    %v253 = vld [vmem:[#allocation2 + $0x12a] sm:$0xff]
    %v254 = vld [vmem:[#allocation2 + $0x13a] sm:$0xff]
    %v255 = vld [vmem:[#allocation2 + $0x142] sm:$0xff]
    %v256 = vld [vmem:[#allocation2 + $0x152] sm:$0xff]
    %v257 = vld [vmem:[#allocation2 + $0x15a] sm:$0xff]
    %v258 = vld [vmem:[#allocation2 + $0x16a] sm:$0xff]
    %v259 = vld [vmem:[#allocation2 + $0x172] sm:$0xff]
    %v260 = vld [vmem:[#allocation2 + $0x182] sm:$0xff]
    %v261 = vld [vmem:[#allocation2 + $0x18a] sm:$0xff]
    %v262 = vld [vmem:[#allocation2 + $0x19a] sm:$0xff]
    %v263 = vld [vmem:[#allocation2 + $0x1a2] sm:$0xff]
    %v264 = vadd.f32 %v192, %v228
    %v265 = vadd.f32 %v193, %v229
    %v266 = vadd.f32 %v194, %v230
    %v267 = vadd.f32 %v195, %v231
    %v268 = vadd.f32 %v196, %v232
    %v269 = vadd.f32 %v197, %v233
    %v270 = vadd.f32 %v198, %v234
    %v271 = vadd.f32 %v199, %v235
    %v272 = vadd.f32 %v200, %v236
    %v273 = vadd.f32 %v201, %v237
    %v274 = vadd.f32 %v202, %v238
    %v275 = vadd.f32 %v203, %v239
    %v276 = vadd.f32 %v204, %v240
    %v277 = vadd.f32 %v205, %v241
    %v278 = vadd.f32 %v206, %v242
    %v279 = vadd.f32 %v207, %v243
    %v280 = vadd.f32 %v208, %v244
    %v281 = vadd.f32 %v209, %v245
    %v282 = vadd.f32 %v210, %v246
    %v283 = vadd.f32 %v211, %v247
    %v284 = vadd.f32 %v212, %v248
    %v285 = vadd.f32 %v213, %v249
    %v286 = vadd.f32 %v214, %v250
    %v287 = vadd.f32 %v215, %v251
    %v288 = vadd.f32 %v216, %v252
    %v289 = vadd.f32 %v217, %v253
    %v290 = vadd.f32 %v218, %v254
    %v291 = vadd.f32 %v219, %v255
    %v292 = vadd.f32 %v220, %v256
    %v293 = vadd.f32 %v221, %v257
    %v294 = vadd.f32 %v222, %v258
    %v295 = vadd.f32 %v223, %v259
    %v296 = vadd.f32 %v224, %v260
    %v297 = vadd.f32 %v225, %v261
    %v298 = vadd.f32 %v226, %v262
    %v299 = vadd.f32 %v227, %v263
    %v300 = vadd.f32 %v264, %v266
    %v301 = vadd.f32 %v265, %v267
    %v302 = vadd.f32 %v266, %v268
    %v303 = vadd.f32 %v267, %v269
    %v304 = vadd.f32 %v268, %v270
    %v305 = vadd.f32 %v269, %v271
    %v306 = vadd.f32 %v270, %v272
    %v307 = vadd.f32 %v271, %v273
    %v308 = vadd.f32 %v272, %v274
    %v309 = vadd.f32 %v273, %v275
    %v310 = vadd.f32 %v274, %v276
    %v311 = vadd.f32 %v275, %v277
    %v312 = vadd.f32 %v276, %v278
    %v313 = vadd.f32 %v277, %v279
    %v314 = vadd.f32 %v278, %v280
    %v315 = vadd.f32 %v279, %v281
    %v316 = vadd.f32 %v280, %v282
    %v317 = vadd.f32 %v281, %v283
    %v318 = vadd.f32 %v282, %v284
    %v319 = vadd.f32 %v283, %v285
    %v320 = vadd.f32 %v284, %v286
    %v321 = vadd.f32 %v285, %v287
    %v322 = vadd.f32 %v286, %v288
    %v323 = vadd.f32 %v287, %v289
    %v324 = vadd.f32 %v288, %v290
    %v325 = vadd.f32 %v289, %v291
    %v326 = vadd.f32 %v290, %v292
    %v327 = vadd.f32 %v291, %v293
    %v328 = vadd.f32 %v292, %v294
    %v329 = vadd.f32 %v293, %v295
    %v330 = vadd.f32 %v294, %v296
    %v331 = vadd.f32 %v295, %v297
    %v332 = vadd.f32 %v300, %v268
    %v333 = vadd.f32 %v301, %v269
    %v334 = vadd.f32 %v302, %v270
    %v335 = vadd.f32 %v303, %v271
    %v336 = vadd.f32 %v304, %v272
    %v337 = vadd.f32 %v305, %v273
    %v338 = vadd.f32 %v306, %v274
    %v339 = vadd.f32 %v307, %v275
    %v340 = vadd.f32 %v308, %v276
    %v341 = vadd.f32 %v309, %v277
    %v342 = vadd.f32 %v310, %v278
    %v343 = vadd.f32 %v311, %v279
    %v344 = vadd.f32 %v312, %v280
    %v345 = vadd.f32 %v313, %v281
    %v346 = vadd.f32 %v314, %v282
    %v347 = vadd.f32 %v315, %v283
    %v348 = vadd.f32 %v316, %v284
    %v349 = vadd.f32 %v317, %v285
    %v350 = vadd.f32 %v318, %v286
    %v351 = vadd.f32 %v319, %v287
    %v352 = vadd.f32 %v320, %v288
    %v353 = vadd.f32 %v321, %v289
    %v354 = vadd.f32 %v322, %v290
    %v355 = vadd.f32 %v323, %v291
    %v356 = vadd.f32 %v324, %v292
    %v357 = vadd.f32 %v325, %v293
    %v358 = vadd.f32 %v326, %v294
    %v359 = vadd.f32 %v327, %v295
    %v360 = vadd.f32 %v328, %v296
    %v361 = vadd.f32 %v329, %v297
    %v362 = vadd.f32 %v330, %v298
    %v363 = vadd.f32 %v331, %v299
    %v364 = vld [vmem:[%s1] sm:$0xff]
    %v365 = vld [vmem:[%s1 + $0x8] sm:$0xff]
    %v366 = vld [vmem:[%s1 + $0x10] sm:$0xff]
    %v367 = vld [vmem:[%s1 + $0x18] sm:$0xff]
    %v368 = vld [vmem:[%s1 + $0x20] sm:$0xff]
    %v369 = vld [vmem:[%s1 + $0x28] sm:$0xff]
    %v370 = vld [vmem:[%s1 + $0x30] sm:$0xff]
    %v371 = vld [vmem:[%s1 + $0x38] sm:$0xff]
    %v372 = vld [vmem:[%s1 + $0x40] sm:$0xff]
    %v373 = vld [vmem:[%s1 + $0x48] sm:$0xff]
    %v374 = vld [vmem:[%s1 + $0x50] sm:$0xff]
    %v375 = vld [vmem:[%s1 + $0x58] sm:$0xff]
    %v376 = vld [vmem:[%s1 + $0x60] sm:$0xff]
    %v377 = vld [vmem:[%s1 + $0x68] sm:$0xff]
    %v378 = vld [vmem:[%s1 + $0x70] sm:$0xff]
    %v379 = vld [vmem:[%s1 + $0x78] sm:$0xff]
    %v380 = vld [vmem:[%s1 + $0x80] sm:$0xff]
    %v381 = vld [vmem:[%s1 + $0x88] sm:$0xff]
    %v382 = vld [vmem:[%s1 + $0x90] sm:$0xff]
    %v383 = vld [vmem:[%s1 + $0x98] sm:$0xff]
    %v384 = vld [vmem:[%s1 + $0xa0] sm:$0xff]
    %v385 = vld [vmem:[%s1 + $0xa8] sm:$0xff]
    %v386 = vld [vmem:[%s1 + $0xb0] sm:$0xff]
    %v387 = vld [vmem:[%s1 + $0xb8] sm:$0xff]
    %v388 = vld [vmem:[%s1 + $0xc0] sm:$0xff]
    %v389 = vld [vmem:[%s1 + $0xc8] sm:$0xff]
    %v390 = vld [vmem:[%s1 + $0xd0] sm:$0xff]
    %v391 = vld [vmem:[%s1 + $0xd8] sm:$0xff]
    %v392 = vld [vmem:[%s1 + $0xe0] sm:$0xff]
    %v393 = vld [vmem:[%s1 + $0xe8] sm:$0xff]
    %v394 = vld [vmem:[%s1 + $0xf0] sm:$0xff]
    %v395 = vld [vmem:[%s1 + $0xf8] sm:$0xff]
    %397 = vset.pattern.permute.xlu0 0
    %398 = vperm.xlu0 %397, %v364
    %v399 = vpop.permute.xlu0 %398
    %402 = vset.pattern.permute.xlu0 0
    %403 = vperm.xlu0 %402, %v365
    %v404 = vpop.permute.xlu0 %403
    %407 = vset.pattern.permute.xlu0 0
    %408 = vperm.xlu0 %407, %v366
    %v409 = vpop.permute.xlu0 %408
    %412 = vset.pattern.permute.xlu0 0
    %413 = vperm.xlu0 %412, %v367
    %v414 = vpop.permute.xlu0 %413
    %417 = vset.pattern.permute.xlu0 0
    %418 = vperm.xlu0 %417, %v368
    %v419 = vpop.permute.xlu0 %418
    %422 = vset.pattern.permute.xlu0 0
    %423 = vperm.xlu0 %422, %v369
    %v424 = vpop.permute.xlu0 %423
    %427 = vset.pattern.permute.xlu0 0
    %428 = vperm.xlu0 %427, %v370
    %v429 = vpop.permute.xlu0 %428
    %432 = vset.pattern.permute.xlu0 0
    %433 = vperm.xlu0 %432, %v371
    %v434 = vpop.permute.xlu0 %433
    %437 = vset.pattern.permute.xlu0 0
    %438 = vperm.xlu0 %437, %v372
    %v439 = vpop.permute.xlu0 %438
    %442 = vset.pattern.permute.xlu0 0
    %443 = vperm.xlu0 %442, %v373
    %v444 = vpop.permute.xlu0 %443
    %447 = vset.pattern.permute.xlu0 0
    %448 = vperm.xlu0 %447, %v374
    %v449 = vpop.permute.xlu0 %448
    %452 = vset.pattern.permute.xlu0 0
    %453 = vperm.xlu0 %452, %v375
    %v454 = vpop.permute.xlu0 %453
    %457 = vset.pattern.permute.xlu0 0
    %458 = vperm.xlu0 %457, %v376
    %v459 = vpop.permute.xlu0 %458
    %462 = vset.pattern.permute.xlu0 0
    %463 = vperm.xlu0 %462, %v377
    %v464 = vpop.permute.xlu0 %463
    %467 = vset.pattern.permute.xlu0 0
    %468 = vperm.xlu0 %467, %v378
    %v469 = vpop.permute.xlu0 %468
    %472 = vset.pattern.permute.xlu0 0
    %473 = vperm.xlu0 %472, %v379
    %v474 = vpop.permute.xlu0 %473
    %477 = vset.pattern.permute.xlu0 0
    %478 = vperm.xlu0 %477, %v380
    %v479 = vpop.permute.xlu0 %478
    %482 = vset.pattern.permute.xlu0 0
    %483 = vperm.xlu0 %482, %v381
    %v484 = vpop.permute.xlu0 %483
    %487 = vset.pattern.permute.xlu0 0
    %488 = vperm.xlu0 %487, %v382
    %v489 = vpop.permute.xlu0 %488
    %492 = vset.pattern.permute.xlu0 0
    %493 = vperm.xlu0 %492, %v383
    %v494 = vpop.permute.xlu0 %493
    %497 = vset.pattern.permute.xlu0 0
    %498 = vperm.xlu0 %497, %v384
    %v499 = vpop.permute.xlu0 %498
    %502 = vset.pattern.permute.xlu0 0
    %503 = vperm.xlu0 %502, %v385
    %v504 = vpop.permute.xlu0 %503
    %507 = vset.pattern.permute.xlu0 0
    %508 = vperm.xlu0 %507, %v386
    %v509 = vpop.permute.xlu0 %508
    %512 = vset.pattern.permute.xlu0 0
    %513 = vperm.xlu0 %512, %v387
    %v514 = vpop.permute.xlu0 %513
    %517 = vset.pattern.permute.xlu0 0
    %518 = vperm.xlu0 %517, %v388
    %v519 = vpop.permute.xlu0 %518
    %522 = vset.pattern.permute.xlu0 0
    %523 = vperm.xlu0 %522, %v389
    %v524 = vpop.permute.xlu0 %523
    %527 = vset.pattern.permute.xlu0 0
    %528 = vperm.xlu0 %527, %v390
    %v529 = vpop.permute.xlu0 %528
    %532 = vset.pattern.permute.xlu0 0
    %533 = vperm.xlu0 %532, %v391
    %v534 = vpop.permute.xlu0 %533
    %537 = vset.pattern.permute.xlu0 0
    %538 = vperm.xlu0 %537, %v392
    %v539 = vpop.permute.xlu0 %538
    %542 = vset.pattern.permute.xlu0 0
    %543 = vperm.xlu0 %542, %v393
    %v544 = vpop.permute.xlu0 %543
    %547 = vset.pattern.permute.xlu0 0
    %548 = vperm.xlu0 %547, %v394
    %v549 = vpop.permute.xlu0 %548
    %552 = vset.pattern.permute.xlu0 0
    %553 = vperm.xlu0 %552, %v395
    %v554 = vpop.permute.xlu0 %553
    %v556 = vmul.f32 %v332, %v399
    %v557 = vmul.f32 %v333, %v404
    %v558 = vmul.f32 %v334, %v409
    %v559 = vmul.f32 %v335, %v414
    %v560 = vmul.f32 %v336, %v419
    %v561 = vmul.f32 %v337, %v424
    %v562 = vmul.f32 %v338, %v429
    %v563 = vmul.f32 %v339, %v434
    %v564 = vmul.f32 %v340, %v439
    %v565 = vmul.f32 %v341, %v444
    %v566 = vmul.f32 %v342, %v449
    %v567 = vmul.f32 %v343, %v454
    %v568 = vmul.f32 %v344, %v459
    %v569 = vmul.f32 %v345, %v464
    %v570 = vmul.f32 %v346, %v469
    %v571 = vmul.f32 %v347, %v474
    %v572 = vmul.f32 %v348, %v479
    %v573 = vmul.f32 %v349, %v484
    %v574 = vmul.f32 %v350, %v489
    %v575 = vmul.f32 %v351, %v494
    %v576 = vmul.f32 %v352, %v499
    %v577 = vmul.f32 %v353, %v504
    %v578 = vmul.f32 %v354, %v509
    %v579 = vmul.f32 %v355, %v514
    %v580 = vmul.f32 %v356, %v519
    %v581 = vmul.f32 %v357, %v524
    %v582 = vmul.f32 %v358, %v529
    %v583 = vmul.f32 %v359, %v534
    %v584 = vmul.f32 %v360, %v539
    %v585 = vmul.f32 %v361, %v544
    %v586 = vmul.f32 %v362, %v549
    %v587 = vmul.f32 %v363, %v554
    %v588 = vld [vmem:[%s0] sm:$0xff]
    %v589 = vld [vmem:[%s0 + $0x8] sm:$0xff]
    %v590 = vld [vmem:[%s0 + $0x10] sm:$0xff]
    %v591 = vld [vmem:[%s0 + $0x18] sm:$0xff]
    %v592 = vld [vmem:[%s0 + $0x20] sm:$0xff]
    %v593 = vld [vmem:[%s0 + $0x28] sm:$0xff]
    %v594 = vld [vmem:[%s0 + $0x30] sm:$0xff]
    %v595 = vld [vmem:[%s0 + $0x38] sm:$0xff]
    %v596 = vld [vmem:[%s0 + $0x40] sm:$0xff]
    %v597 = vld [vmem:[%s0 + $0x48] sm:$0xff]
    %v598 = vld [vmem:[%s0 + $0x50] sm:$0xff]
    %v599 = vld [vmem:[%s0 + $0x58] sm:$0xff]
    %v600 = vld [vmem:[%s0 + $0x60] sm:$0xff]
    %v601 = vld [vmem:[%s0 + $0x68] sm:$0xff]
    %v602 = vld [vmem:[%s0 + $0x70] sm:$0xff]
    %v603 = vld [vmem:[%s0 + $0x78] sm:$0xff]
    %v604 = vld [vmem:[%s0 + $0x80] sm:$0xff]
    %v605 = vld [vmem:[%s0 + $0x88] sm:$0xff]
    %v606 = vld [vmem:[%s0 + $0x90] sm:$0xff]
    %v607 = vld [vmem:[%s0 + $0x98] sm:$0xff]
    %v608 = vld [vmem:[%s0 + $0xa0] sm:$0xff]
    %v609 = vld [vmem:[%s0 + $0xa8] sm:$0xff]
    %v610 = vld [vmem:[%s0 + $0xb0] sm:$0xff]
    %v611 = vld [vmem:[%s0 + $0xb8] sm:$0xff]
    %v612 = vld [vmem:[%s0 + $0xc0] sm:$0xff]
    %v613 = vld [vmem:[%s0 + $0xc8] sm:$0xff]
    %v614 = vld [vmem:[%s0 + $0xd0] sm:$0xff]
    %v615 = vld [vmem:[%s0 + $0xd8] sm:$0xff]
    %v616 = vld [vmem:[%s0 + $0xe0] sm:$0xff]
    %v617 = vld [vmem:[%s0 + $0xe8] sm:$0xff]
    %v618 = vld [vmem:[%s0 + $0xf0] sm:$0xff]
    %v619 = vld [vmem:[%s0 + $0xf8] sm:$0xff]
    %v620 = vsub.f32 %v556, %v588
    %v621 = vsub.f32 %v557, %v589
    %v622 = vsub.f32 %v558, %v590
    %v623 = vsub.f32 %v559, %v591
    %v624 = vsub.f32 %v560, %v592
    %v625 = vsub.f32 %v561, %v593
    %v626 = vsub.f32 %v562, %v594
    %v627 = vsub.f32 %v563, %v595
    %v628 = vsub.f32 %v564, %v596
    %v629 = vsub.f32 %v565, %v597
    %v630 = vsub.f32 %v566, %v598
    %v631 = vsub.f32 %v567, %v599
    %v632 = vsub.f32 %v568, %v600
    %v633 = vsub.f32 %v569, %v601
    %v634 = vsub.f32 %v570, %v602
    %v635 = vsub.f32 %v571, %v603
    %v636 = vsub.f32 %v572, %v604
    %v637 = vsub.f32 %v573, %v605
    %v638 = vsub.f32 %v574, %v606
    %v639 = vsub.f32 %v575, %v607
    %v640 = vsub.f32 %v576, %v608
    %v641 = vsub.f32 %v577, %v609
    %v642 = vsub.f32 %v578, %v610
    %v643 = vsub.f32 %v579, %v611
    %v644 = vsub.f32 %v580, %v612
    %v645 = vsub.f32 %v581, %v613
    %v646 = vsub.f32 %v582, %v614
    %v647 = vsub.f32 %v583, %v615
    %v648 = vsub.f32 %v584, %v616
    %v649 = vsub.f32 %v585, %v617
    %v650 = vsub.f32 %v586, %v618
    %v651 = vsub.f32 %v587, %v619
    %652 = vst [vmem:[#allocation3] sm:$0xff] %v620
    %653 = vst [vmem:[#allocation3 + $0x8] sm:$0xff] %v621
    %654 = vst [vmem:[#allocation3 + $0x10] sm:$0xff] %v622
    %655 = vst [vmem:[#allocation3 + $0x18] sm:$0xff] %v623
    %656 = vst [vmem:[#allocation3 + $0x20] sm:$0xff] %v624
    %657 = vst [vmem:[#allocation3 + $0x28] sm:$0xff] %v625
    %658 = vst [vmem:[#allocation3 + $0x30] sm:$0xff] %v626
    %659 = vst [vmem:[#allocation3 + $0x38] sm:$0xff] %v627
    %660 = vst [vmem:[#allocation3 + $0x40] sm:$0xff] %v628
    %661 = vst [vmem:[#allocation3 + $0x48] sm:$0xff] %v629
    %662 = vst [vmem:[#allocation3 + $0x50] sm:$0xff] %v630
    %663 = vst [vmem:[#allocation3 + $0x58] sm:$0xff] %v631
    %664 = vst [vmem:[#allocation3 + $0x60] sm:$0xff] %v632
    %665 = vst [vmem:[#allocation3 + $0x68] sm:$0xff] %v633
    %666 = vst [vmem:[#allocation3 + $0x70] sm:$0xff] %v634
    %667 = vst [vmem:[#allocation3 + $0x78] sm:$0xff] %v635
    %668 = vst [vmem:[#allocation3 + $0x80] sm:$0xff] %v636
    %669 = vst [vmem:[#allocation3 + $0x88] sm:$0xff] %v637
    %670 = vst [vmem:[#allocation3 + $0x90] sm:$0xff] %v638
    %671 = vst [vmem:[#allocation3 + $0x98] sm:$0xff] %v639
    %672 = vst [vmem:[#allocation3 + $0xa0] sm:$0xff] %v640
    %673 = vst [vmem:[#allocation3 + $0xa8] sm:$0xff] %v641
    %674 = vst [vmem:[#allocation3 + $0xb0] sm:$0xff] %v642
    %675 = vst [vmem:[#allocation3 + $0xb8] sm:$0xff] %v643
    %676 = vst [vmem:[#allocation3 + $0xc0] sm:$0xff] %v644
    %677 = vst [vmem:[#allocation3 + $0xc8] sm:$0xff] %v645
    %678 = vst [vmem:[#allocation3 + $0xd0] sm:$0xff] %v646
    %679 = vst [vmem:[#allocation3 + $0xd8] sm:$0xff] %v647
    %680 = vst [vmem:[#allocation3 + $0xe0] sm:$0xff] %v648
    %681 = vst [vmem:[#allocation3 + $0xe8] sm:$0xff] %v649
    %682 = vst [vmem:[#allocation3 + $0xf0] sm:$0xff] %v650
    %683 = vst [vmem:[#allocation3 + $0xf8] sm:$0xff] %v651
    // Predicated region
    $region10: #{tpu_custom_call.1} parent=1 // pred_check
      _
    $region11: #{tpu_custom_call.1} parent=1 // pred_check_branch
      %685 = sbr.rel (0) target = $region13
    $region12: #{tpu_custom_call.1} parent=1 // pred_region
      %s687 = ssub.s32 4096, 4096
      %688 = vsyncadd [#allocation4], %s687
      %s689 = sshll.u32 [#allocation3], 4
      %s690 = int_to_ptr.vmem [resolvable:$true] %s689
      %695 = dma.vmem_to_hbm [thread:$0]  %s690, 4096, %s2, [#allocation4], 128, 128, 8
    $region13: #{tpu_custom_call.1} parent=1 // pred_fallthru
      _
    // Predicated region
    $region14: #{tpu_custom_call.1} parent=1 // pred_check
      _
    $region15: #{tpu_custom_call.1} parent=1 // pred_check_branch
      %697 = sbr.rel (0) target = $region17
    $region16: #{tpu_custom_call.1} parent=1 // pred_region
      %698 = dma.done [#allocation4], 4096
    $region17: #{tpu_custom_call.1} parent=1 // pred_fallthru
      _
    %699 = vsyncpa [#allocation4], 1

</llo_original>
